<compile_context>
chip_gen: v5e
topology: v5e:2x2
jax: 0.10.0
libtpu: 0.0.40
codegen_flags: <defaults>
</compile_context>

<pallas_src>
import functools
import math

import jax
import jax.numpy as jnp
from jax.experimental import pallas as pl
from jax.experimental.pallas import tpu as pltpu

_BF16 = jnp.bfloat16
_F32 = jnp.float32


# --------------------------------------------------------------------------- #
# math helpers
# --------------------------------------------------------------------------- #
def _elu_p1(x):
    """elu(x) + 1 (LoFTR linear-attention feature map)."""
    return jnp.where(x > 0.0, x + 1.0, jnp.exp(jnp.minimum(x, 0.0)))


def _layernorm(x, w, b, eps=1e-5):
    mu = jnp.mean(x, axis=-1, keepdims=True)
    var = jnp.mean((x - mu) ** 2, axis=-1, keepdims=True)
    return (x - mu) * jax.lax.rsqrt(var + eps) * w + b


def _erf_poly(x):
    """Abramowitz & Stegun 7.1.26 erf (max abs err ~1.5e-7).  KERNEL-ONLY:
    the rational term uses pl.reciprocal(approx=True) so it lands on the EUP
    slot instead of a VALU divide (review: v6e/v7x VALU relief)."""
    p = 0.3275911
    a1, a2, a3, a4, a5 = (0.254829592, -0.284496736, 1.421413741,
                          -1.453152027, 1.061405429)
    ax = jnp.abs(x)
    t = pl.reciprocal(1.0 + p * ax, approx=True)
    poly = ((((a5 * t + a4) * t + a3) * t + a2) * t + a1) * t
    y = 1.0 - poly * jnp.exp(-ax * ax)
    return jnp.where(x >= 0.0, y, -y)


def _gelu_exact(x):
    # matches torch.nn.GELU() default (erf-based)
    return 0.5 * x * (1.0 + _erf_poly(x * (1.0 / math.sqrt(2.0))))


# --------------------------------------------------------------------------- #
# Pass 1: KV / ksum reduction over the sequence (kv-tile axis = reduction)
# --------------------------------------------------------------------------- #
def _kv_reduce_kernel(score_ref, x_ref, src_ref, wkv_ref, mask_ref,
                      kv_out_ref, ksum_out_ref, kv_acc, ksum_acc,
                      *, d_model, tile, valid_len):
    ki = pl.program_id(1)

    @pl.when(ki == 0)
    def _():
        kv_acc[...] = jnp.zeros_like(kv_acc)
        ksum_acc[...] = jnp.zeros_like(ksum_acc)

    # Binarized-score select done in-kernel from an SMEM scalar (review:
    # saves a full [B,L,C] f32 HBM write + read of the blended source).
    # score is exactly 0 or 1, so the arithmetic blend is an exact select.
    s = score_ref[0]
    src = s * x_ref[0] + (1.0 - s) * src_ref[0]               # [Lt, C] f32

    # Fused K/V projection: one [Lt,C] x [C,2C] bf16 matmul on the MXU.
    # NOTE: production d_model should be a multiple of 128 so this lane slice
    # is vreg-aligned (the tiny self-test C=32 exercises the full-dim path).
    kvp = jnp.dot(src.astype(_BF16), wkv_ref[...],
                  preferred_element_type=_F32)                # [Lt, 2C]
    kf = _elu_p1(kvp[:, :d_model])                            # phi(K), [Lt, C]
    vs = kvp[:, d_model:]                                     # V (1/L cancels)

    if valid_len is not None:
        # Zero padded K rows: phi(0)=1 would otherwise pollute KV / ksum.
        row = jax.lax.broadcasted_iota(jnp.int32, (tile, 1), 0) + ki * tile
        kf = kf * (row < valid_len).astype(_F32)

    # Full-width KV += phi(K)^T @ V; cross-head blocks masked once at the end.
    # (Review: verify via pl.lower_as_mlir that this (((0,),(0,))) dot_general
    #  lowers without an XLU transpose of the [Lt,C] tile.)
    kv_acc[...] += jax.lax.dot_general(
        kf.astype(_BF16), vs.astype(_BF16),
        (((0,), (0,)), ((), ())), preferred_element_type=_F32)
    ksum_acc[...] += jnp.sum(kf, axis=0, keepdims=True)       # [1, C] f32

    @pl.when(ki == pl.num_programs(1) - 1)
    def _():
        # Ship the masked KV in bf16 (review): halves HBM writeback + pass-2
        # re-read and removes the per-tile [C,C] f32->bf16 cast in pass 2.
        kv_out_ref[0] = (kv_acc[...] * mask_ref[...]).astype(_BF16)
        ksum_out_ref[0] = ksum_acc[...]


# --------------------------------------------------------------------------- #
# Pass 2: per q-tile attention output + merge + MLP + residual
# --------------------------------------------------------------------------- #
def _attn_mlp_kernel(x_ref, kv_ref, mks_ref,
                     wq_ref, wm_ref, ln1w_ref, ln1b_ref,
                     w1a_ref, w1b_ref, w2_ref, ln2w_ref, ln2b_ref,
                     out_ref):
    x = x_ref[0]                                              # [Lt, C] f32
    x_b = x.astype(_BF16)

    # q projection + feature map
    q = jnp.dot(x_b, wq_ref[...], preferred_element_type=_F32)
    qf_b = _elu_p1(q).astype(_BF16)

    # numerator / denominator: two full-width [Lt,C] x [C,C] bf16 matmuls
    # against the pre-masked KV / masked-ksum states.  (Review: masked_ksum
    # replaces the per-tile (qf*ksum) VPU multiply + mask DMA; the LoFTR 1/L
    # and *L scalings cancel analytically and are dropped.)
    num = jnp.dot(qf_b, kv_ref[0], preferred_element_type=_F32)
    den = jnp.dot(qf_b, mks_ref[0], preferred_element_type=_F32)
    msg = num * pl.reciprocal(den + 1e-6, approx=True)        # EUP

    # merge projection + LayerNorm1 (LN in f32)
    msg = jnp.dot(msg.astype(_BF16), wm_ref[...], preferred_element_type=_F32)
    msg = _layernorm(msg, ln1w_ref[...], ln1b_ref[...])

    # mlp1(cat([x, message])) as a split matmul into one accumulator, erf GELU
    hdn = (jnp.dot(x_b, w1a_ref[...], preferred_element_type=_F32)
           + jnp.dot(msg.astype(_BF16), w1b_ref[...], preferred_element_type=_F32))
    hdn = _gelu_exact(hdn)
    m2 = jnp.dot(hdn.astype(_BF16), w2_ref[...], preferred_element_type=_F32)

    # drop_path is identity in eval mode; LayerNorm2; residual
    m2 = _layernorm(m2, ln2w_ref[...], ln2b_ref[...])
    out_ref[0] = x + m2


# --------------------------------------------------------------------------- #
# wrapper helpers
# --------------------------------------------------------------------------- #
def _plan_tiles(L, max_tile=512):
    """Pick (tile, padded_len).  Prefer an exact divisor (multiple of 8,
    <= max_tile); otherwise pad L up to a multiple of max_tile (padded K rows
    are masked in pass 1).  Never silently falls back to lt == L for long
    sequences (review: VMEM safety)."""
    if L <= max_tile:
        return L, L                      # single full-extent tile (always legal)
    for t in range(max_tile, 7, -8):
        if L % t == 0:
            return t, L
    L_pad = ((L + max_tile - 1) // max_tile) * max_tile
    return max_tile, L_pad


def _const_spec(shape):
    """BlockSpec for a grid-invariant operand (weights / LN params / mask):
    constant index map + single buffering (review: frees VMEM, esp. on v7x)."""
    idx = lambda *_: (0,) * len(shape)
    try:
        return pl.BlockSpec(shape, idx, pipeline_mode=pl.Buffered(1))
    except Exception:                    # pipeline_mode unavailable -> default
        return pl.BlockSpec(shape, idx)


def _compiler_params(dim_sem):
    kw = dict(dimension_semantics=dim_sem)
    # Review (v7x): never claim the full physical VMEM.  Budget ~75% of the
    # queried capacity (48 MiB on v7x, 96 MiB on v5e/v6e); fall back to the
    # compiler default scoped limit if the query is unavailable.
    try:
        cap = int(pltpu.get_tpu_info().vmem_capacity_bytes)
        if cap >= (32 << 20):
            kw["vmem_limit_bytes"] = min(cap * 3 // 4, 96 << 20)
    except Exception:
        pass
    return pltpu.CompilerParams(**kw)


# --------------------------------------------------------------------------- #
# forward pass
# --------------------------------------------------------------------------- #
def dsap_encoder_layer(x, source, params):
    B, L, C = x.shape
    lt, L_pad = _plan_tiles(L)
    n_t = L_pad // lt

    if L_pad != L:
        padw = ((0, 0), (0, L_pad - L), (0, 0))
        x_p, src_p = jnp.pad(x, padw), jnp.pad(source, padw)
        valid_len = L
    else:
        x_p, src_p = x, source
        valid_len = None

    # ---- pass 1: KV / ksum reduction over the sequence --------------------
    kv, ksum = pl.pallas_call(
        functools.partial(_kv_reduce_kernel, d_model=C, tile=lt,
                          valid_len=valid_len),
        out_shape=(jax.ShapeDtypeStruct((B, C, C), _BF16),
                   jax.ShapeDtypeStruct((B, 1, C), _F32)),
        grid=(B, n_t),
        in_specs=[
            pl.BlockSpec(memory_space=pltpu.MemorySpace.SMEM),  # binarized score
            pl.BlockSpec((1, lt, C), lambda b, k: (b, k, 0)),   # x tile
            pl.BlockSpec((1, lt, C), lambda b, k: (b, k, 0)),   # source tile
            _const_spec((C, 2 * C)),                            # [Wk^T | Wv^T] bf16
            _const_spec((C, C)),                                # block-diag head mask
        ],
        out_specs=(pl.BlockSpec((1, C, C), lambda b, k: (b, 0, 0)),
                   pl.BlockSpec((1, 1, C), lambda b, k: (b, 0, 0))),
        scratch_shapes=[pltpu.VMEM((C, C), _F32),
                        pltpu.VMEM((1, C), _F32)],
        compiler_params=_compiler_params(("parallel", "arbitrary")),
    )(params["score_bin"], x_p, src_p, params["wkvT"], params["mask"])

    # Tiny one-shot glue: masked_ksum[b,c',c] = mask[c',c] * ksum[b,c']  (bf16).
    # Hoisted here (elementwise, once per call) so pass 2 needs neither the
    # mask nor a per-tile VPU multiply for the denominator.
    mksum = (params["mask"][None] * jnp.swapaxes(ksum, 1, 2)).astype(_BF16)

    # ---- pass 2: q-side attention + merge + MLP per sequence tile ---------
    out = pl.pallas_call(
        _attn_mlp_kernel,
        out_shape=jax.ShapeDtypeStruct((B, L_pad, C), _F32),
        grid=(B, n_t),
        in_specs=[
            pl.BlockSpec((1, lt, C), lambda b, i: (b, i, 0)),   # x tile
            pl.BlockSpec((1, C, C), lambda b, i: (b, 0, 0)),    # masked KV (bf16)
            pl.BlockSpec((1, C, C), lambda b, i: (b, 0, 0)),    # masked ksum (bf16)
            _const_spec((C, C)),                                # Wq^T
            _const_spec((C, C)),                                # Wmerge^T
            _const_spec((1, C)),                                # ln1 weight
            _const_spec((1, C)),                                # ln1 bias
            _const_spec((C, 4 * C)),                            # W1^T x-half
            _const_spec((C, 4 * C)),                            # W1^T msg-half
            _const_spec((4 * C, C)),                            # W2^T
            _const_spec((1, C)),                                # ln2 weight
            _const_spec((1, C)),                                # ln2 bias
        ],
        out_specs=pl.BlockSpec((1, lt, C), lambda b, i: (b, i, 0)),
        compiler_params=_compiler_params(("parallel", "parallel")),
    )(x_p, kv, mksum, params["wqT"], params["wmT"],
      params["ln1_w"], params["ln1_b"],
      params["w1aT"], params["w1bT"], params["w2T"],
      params["ln2_w"], params["ln2_b"])

    if L_pad != L:
        out = out[:, :L]
    return out, params["score_raw"]


# --------------------------------------------------------------------------- #
# parameters
# --------------------------------------------------------------------------- #
def make_params(key, d_model, nhead):
    ks = jax.random.split(key, 17)

    def w(k, shape, scale=0.08):
        return jax.random.normal(k, shape, _F32) * scale

    # PyTorch Linear weights are [out_features, in_features]; cross_weight is
    # the second branch blended by the binarized score.
    wq, wq_c = w(ks[0], (d_model, d_model)), w(ks[1], (d_model, d_model))
    wk, wk_c = w(ks[2], (d_model, d_model)), w(ks[3], (d_model, d_model))
    wv, wv_c = w(ks[4], (d_model, d_model)), w(ks[5], (d_model, d_model))
    wm, wm_c = w(ks[6], (d_model, d_model)), w(ks[7], (d_model, d_model))
    w1, w1_c = w(ks[8], (4 * d_model, 2 * d_model)), w(ks[9], (4 * d_model, 2 * d_model))
    w2, w2_c = w(ks[10], (d_model, 4 * d_model)), w(ks[11], (d_model, 4 * d_model))
    ln1_w = 1.0 + 0.1 * jax.random.normal(ks[12], (d_model,), _F32)
    ln1_b = 0.1 * jax.random.normal(ks[13], (d_model,), _F32)
    ln2_w = 1.0 + 0.1 * jax.random.normal(ks[14], (d_model,), _F32)
    ln2_b = 0.1 * jax.random.normal(ks[15], (d_model,), _F32)

    # self.score = nn.Parameter(torch.rand(1)); current_iter==0 -> score = self.score
    score_raw = jax.random.uniform(ks[16], (1,), _F32)
    # BinarizerFn: score <= 0.5 -> 1.0 ; score > 0.5 -> 0.0
    score_bin = jnp.where(score_raw <= 0.5, 1.0, 0.0).astype(_F32)   # shape (1,)
    s = score_bin[0]

    def blend_T(a, b):
        # score-blended rewrite_linear weight, transposed to [in,out], bf16 (MXU)
        return (s * a + (1.0 - s) * b).T.astype(_BF16)

    w1T = blend_T(w1, w1_c)                                     # [2d, 4d]
    head_dim = d_model // nhead
    head_id = jnp.arange(d_model) // head_dim
    mask = (head_id[:, None] == head_id[None, :]).astype(_F32)  # block-diag [C, C]

    return dict(
        score_raw=score_raw,
        score_bin=score_bin,
        mask=mask,
        wqT=blend_T(wq, wq_c),
        wkvT=jnp.concatenate([blend_T(wk, wk_c), blend_T(wv, wv_c)], axis=1),
        wmT=blend_T(wm, wm_c),
        w1aT=w1T[:d_model], w1bT=w1T[d_model:],
        w2T=blend_T(w2, w2_c),
        ln1_w=ln1_w.reshape(1, d_model), ln1_b=ln1_b.reshape(1, d_model),
        ln2_w=ln2_w.reshape(1, d_model), ln2_b=ln2_b.reshape(1, d_model),
    )


# --------------------------------------------------------------------------- #
# plain-JAX reference (backend-agnostic: NO bf16 dots — emulate bf16 operand
# rounding explicitly and matmul in f32, mirroring the kernel numerics)
# --------------------------------------------------------------------------- #
def reference(x, source, params):
    B, L, C = x.shape

    def rb(t):   # emulate the kernel's bf16 operand rounding
        return t.astype(_BF16).astype(_F32)

    def fw(t):   # bf16 weight -> f32 for a CPU/TPU-safe f32 matmul
        return t.astype(_F32)

    s = params["score_bin"]
    src = s * x + (1.0 - s) * source
    mask = params["mask"]

    kvp = jnp.einsum("blc,cd->bld", rb(src), fw(params["wkvT"]))
    k, v = kvp[..., :C], kvp[..., C:]
    Kf = _elu_p1(k)
    KV = jnp.einsum("blc,bld->bcd", rb(Kf), rb(v))              # [B, C, C]
    kv_m = rb(KV * mask[None])                                  # bf16-rounded
    ksum = jnp.sum(Kf, axis=1)                                  # [B, C]
    mks = rb(mask[None] * ksum[:, :, None])                     # [B, C, C]

    q = jnp.einsum("blc,cd->bld", rb(x), fw(params["wqT"]))
    Qf = _elu_p1(q)
    num = jnp.einsum("blc,bcd->bld", rb(Qf), kv_m)
    den = jnp.einsum("blc,bcd->bld", rb(Qf), mks)
    msg = num / (den + 1e-6)

    msg = jnp.einsum("blc,cd->bld", rb(msg), fw(params["wmT"]))
    msg = _layernorm(msg, params["ln1_w"], params["ln1_b"])

    hdn = (jnp.einsum("blc,cd->bld", rb(x), fw(params["w1aT"]))
           + jnp.einsum("blc,cd->bld", rb(msg), fw(params["w1bT"])))
    hdn = 0.5 * hdn * (1.0 + jax.lax.erf(hdn / math.sqrt(2.0)))  # exact GELU
    m2 = jnp.einsum("blc,cd->bld", rb(hdn), fw(params["w2T"]))
    m2 = _layernorm(m2, params["ln2_w"], params["ln2_b"])
    return x + m2


if __name__ == "__main__":
    key = jax.random.PRNGKey(0)
    B, L, d_model, nhead = 2, 8, 32, 4
    kx, ksrc, kp = jax.random.split(key, 3)
    x = jax.random.normal(kx, (B, L, d_model), _F32)
    source = jax.random.normal(ksrc, (B, L, d_model), _F32)
    params = make_params(kp, d_model, nhead)

    out, score = dsap_encoder_layer(x, source, params)
    out = jax.block_until_ready(out)
    assert out.shape == (B, L, d_model)

    ref = jax.block_until_ready(reference(x, source, params))
    err = float(jnp.max(jnp.abs(out - ref)))
    assert err < 3e-2, f"max abs err {err}"
    print("KERNEL_OK")
</pallas_src>

<mosaic_0001>
module attributes {stable_mosaic.version = 11 : i64} {
  func.func @_kv_reduce_kernel(%arg0: i32, %arg1: i32, %arg2: memref<1xf32, #tpu.memory_space<smem>>, %arg3: memref<1x8x32xf32, #tpu.memory_space<vmem>>, %arg4: memref<1x8x32xf32, #tpu.memory_space<vmem>>, %arg5: memref<32x64xbf16, #tpu.memory_space<vmem>>, %arg6: memref<32x32xf32, #tpu.memory_space<vmem>>, %arg7: memref<1x32x32xbf16, #tpu.memory_space<vmem>>, %arg8: memref<1x1x32xf32, #tpu.memory_space<vmem>>, %arg9: memref<32x32xf32, #tpu.memory_space<vmem>>, %arg10: memref<1x32xf32, #tpu.memory_space<vmem>>) attributes {dimension_semantics = [#tpu.dimension_semantics<parallel>, #tpu.dimension_semantics<arbitrary>], iteration_bounds = array<i64: 2, 1>, scalar_prefetch = 0 : i64, scratch_operands = 2 : i64, tpu.core_type = #tpu.core_type<tc>, window_params = [{transform_indices = @transform_0, window_bounds = array<i64: 1>}, {transform_indices = @transform_1, window_bounds = array<i64: 1, 8, 32>}, {transform_indices = @transform_2, window_bounds = array<i64: 1, 8, 32>}, {pipeline_mode = #tpu.pipeline_mode<synchronous>, transform_indices = @transform_3, window_bounds = array<i64: 32, 64>}, {pipeline_mode = #tpu.pipeline_mode<synchronous>, transform_indices = @transform_4, window_bounds = array<i64: 32, 32>}, {transform_indices = @transform_5, window_bounds = array<i64: 1, 32, 32>}, {transform_indices = @transform_6, window_bounds = array<i64: 1, 1, 32>}]} {
    %c0_i32 = arith.constant 0 : i32
    %0 = arith.cmpi eq, %arg1, %c0_i32 : i32
    %1 = arith.extui %0 : i1 to i32
    %c0_i32_0 = arith.constant 0 : i32
    %2 = arith.cmpi ne, %1, %c0_i32_0 : i32
    scf.if %2 {
      %cst_25 = arith.constant 0.000000e+00 : f32
      %41 = vector.broadcast %cst_25 : f32 to vector<32x32xf32>
      %c0_26 = arith.constant 0 : index
      %c0_27 = arith.constant 0 : index
      %42 = vector.load %arg9[%c0_26, %c0_27] : memref<32x32xf32, #tpu.memory_space<vmem>>, vector<32x32xf32>
      tpu.vector_store %arg9[%c0_26, %c0_27], %41 {strides = array<i32>} : memref<32x32xf32, #tpu.memory_space<vmem>>, vector<32x32xf32>,
      %cst_28 = arith.constant 0.000000e+00 : f32
      %43 = vector.broadcast %cst_28 : f32 to vector<1x32xf32>
      %c0_29 = arith.constant 0 : index
      %c0_30 = arith.constant 0 : index
      %44 = vector.load %arg10[%c0_29, %c0_30] : memref<1x32xf32, #tpu.memory_space<vmem>>, vector<1x32xf32>
      tpu.vector_store %arg10[%c0_29, %c0_30], %43 {strides = array<i32>} : memref<1x32xf32, #tpu.memory_space<vmem>>, vector<1x32xf32>,
    } else {
    }
    %c0 = arith.constant 0 : index
    %3 = memref.load %arg2[%c0] : memref<1xf32, #tpu.memory_space<smem>>
    %c0_1 = arith.constant 0 : index
    %c0_2 = arith.constant 0 : index
    %c0_3 = arith.constant 0 : index
    %4 = vector.load %arg3[%c0_1, %c0_2, %c0_3] : memref<1x8x32xf32, #tpu.memory_space<vmem>>, vector<1x8x32xf32>
    %5 = vector.shape_cast %4 : vector<1x8x32xf32> to vector<8x32xf32>
    %6 = vector.broadcast %3 : f32 to vector<8x32xf32>
    %7 = arith.mulf %6, %5 : vector<8x32xf32>
    %cst = arith.constant 1.000000e+00 : f32
    %8 = arith.subf %cst, %3 : f32
    %c0_4 = arith.constant 0 : index
    %c0_5 = arith.constant 0 : index
    %c0_6 = arith.constant 0 : index
    %9 = vector.load %arg4[%c0_4, %c0_5, %c0_6] : memref<1x8x32xf32, #tpu.memory_space<vmem>>, vector<1x8x32xf32>
    %10 = vector.shape_cast %9 : vector<1x8x32xf32> to vector<8x32xf32>
    %11 = vector.broadcast %8 : f32 to vector<8x32xf32>
    %12 = arith.mulf %11, %10 : vector<8x32xf32>
    %13 = arith.addf %7, %12 : vector<8x32xf32>
    %14 = arith.truncf %13 : vector<8x32xf32> to vector<8x32xbf16>
    %c0_7 = arith.constant 0 : index
    %c0_8 = arith.constant 0 : index
    %15 = vector.load %arg5[%c0_7, %c0_8] : memref<32x64xbf16, #tpu.memory_space<vmem>>, vector<32x64xbf16>
    %cst_9 = arith.constant dense<0.000000e+00> : vector<8x64xf32>
    %16 = tpu.matmul %14, %15, %cst_9 {dimension_numbers = #tpu.dot_dimension_numbers<[1], [0], [0], [1], [0, 0, 1, 1], [], []>} : vector<8x32xbf16>, vector<32x64xbf16>, vector<8x64xf32> -> vector<8x64xf32>
    %17 = vector.extract_strided_slice %16 {offsets = [0, 0], sizes = [8, 32], strides = [1, 1]} : vector<8x64xf32> to vector<8x32xf32>
    %cst_10 = arith.constant 0.000000e+00 : f32
    %18 = vector.broadcast %cst_10 : f32 to vector<8x32xf32>
    %19 = arith.cmpf ogt, %17, %18 : vector<8x32xf32>
    %cst_11 = arith.constant 1.000000e+00 : f32
    %20 = vector.broadcast %cst_11 : f32 to vector<8x32xf32>
    %21 = arith.addf %17, %20 : vector<8x32xf32>
    %cst_12 = arith.constant 0.000000e+00 : f32
    %22 = vector.broadcast %cst_12 : f32 to vector<8x32xf32>
    %23 = arith.minimumf %17, %22 : vector<8x32xf32>
    %24 = math.exp %23 : vector<8x32xf32>
    %25 = arith.select %19, %21, %24 : vector<8x32xi1>, vector<8x32xf32>
    %26 = vector.extract_strided_slice %16 {offsets = [0, 32], sizes = [8, 32], strides = [1, 1]} : vector<8x64xf32> to vector<8x32xf32>
    %c0_13 = arith.constant 0 : index
    %c0_14 = arith.constant 0 : index
    %27 = vector.load %arg9[%c0_13, %c0_14] : memref<32x32xf32, #tpu.memory_space<vmem>>, vector<32x32xf32>
    %28 = arith.truncf %25 : vector<8x32xf32> to vector<8x32xbf16>
    %29 = arith.truncf %26 : vector<8x32xf32> to vector<8x32xbf16>
    %cst_15 = arith.constant dense<0.000000e+00> : vector<32x32xf32>
    %30 = tpu.matmul %28, %29, %cst_15 {dimension_numbers = #tpu.dot_dimension_numbers<[0], [0], [1], [1], [0, 1, 1, 1], [], []>} : vector<8x32xbf16>, vector<8x32xbf16>, vector<32x32xf32> -> vector<32x32xf32>
    %31 = arith.addf %27, %30 : vector<32x32xf32>
    %c0_16 = arith.constant 0 : index
    %c0_17 = arith.constant 0 : index
    %32 = vector.load %arg9[%c0_16, %c0_17] : memref<32x32xf32, #tpu.memory_space<vmem>>, vector<32x32xf32>
    tpu.vector_store %arg9[%c0_16, %c0_17], %31 {strides = array<i32>} : memref<32x32xf32, #tpu.memory_space<vmem>>, vector<32x32xf32>,
    %c0_18 = arith.constant 0 : index
    %c0_19 = arith.constant 0 : index
    %33 = vector.load %arg10[%c0_18, %c0_19] : memref<1x32xf32, #tpu.memory_space<vmem>>, vector<1x32xf32>
    %cst_20 = arith.constant dense<0.000000e+00> : vector<32xf32>
    %34 = vector.multi_reduction <add>, %25, %cst_20 [0] : vector<8x32xf32> to vector<32xf32>
    %35 = vector.shape_cast %34 : vector<32xf32> to vector<1x32xf32>
    %36 = arith.addf %33, %35 : vector<1x32xf32>
    %c0_21 = arith.constant 0 : index
    %c0_22 = arith.constant 0 : index
    %37 = vector.load %arg10[%c0_21, %c0_22] : memref<1x32xf32, #tpu.memory_space<vmem>>, vector<1x32xf32>
    tpu.vector_store %arg10[%c0_21, %c0_22], %36 {strides = array<i32>} : memref<1x32xf32, #tpu.memory_space<vmem>>, vector<1x32xf32>,
    %c0_i32_23 = arith.constant 0 : i32
    %38 = arith.cmpi eq, %arg1, %c0_i32_23 : i32
    %39 = arith.extui %38 : i1 to i32
    %c0_i32_24 = arith.constant 0 : i32
    %40 = arith.cmpi ne, %39, %c0_i32_24 : i32
    scf.if %40 {
      %c0_25 = arith.constant 0 : index
      %c0_26 = arith.constant 0 : index
      %41 = vector.load %arg9[%c0_25, %c0_26] : memref<32x32xf32, #tpu.memory_space<vmem>>, vector<32x32xf32>
      %c0_27 = arith.constant 0 : index
      %c0_28 = arith.constant 0 : index
      %42 = vector.load %arg6[%c0_27, %c0_28] : memref<32x32xf32, #tpu.memory_space<vmem>>, vector<32x32xf32>
      %43 = arith.mulf %41, %42 : vector<32x32xf32>
      %44 = arith.truncf %43 : vector<32x32xf32> to vector<32x32xbf16>
      %c0_29 = arith.constant 0 : index
      %c0_30 = arith.constant 0 : index
      %c0_31 = arith.constant 0 : index
      %45 = vector.load %arg7[%c0_29, %c0_30, %c0_31] : memref<1x32x32xbf16, #tpu.memory_space<vmem>>, vector<1x32x32xbf16>
      %46 = vector.shape_cast %45 : vector<1x32x32xbf16> to vector<32x32xbf16>
      %47 = vector.shape_cast %44 : vector<32x32xbf16> to vector<1x32x32xbf16>
      tpu.vector_store %arg7[%c0_29, %c0_30, %c0_31], %47 {strides = array<i32>} : memref<1x32x32xbf16, #tpu.memory_space<vmem>>, vector<1x32x32xbf16>,
      %c0_32 = arith.constant 0 : index
      %c0_33 = arith.constant 0 : index
      %48 = vector.load %arg10[%c0_32, %c0_33] : memref<1x32xf32, #tpu.memory_space<vmem>>, vector<1x32xf32>
      %c0_34 = arith.constant 0 : index
      %c0_35 = arith.constant 0 : index
      %c0_36 = arith.constant 0 : index
      %49 = vector.load %arg8[%c0_34, %c0_35, %c0_36] : memref<1x1x32xf32, #tpu.memory_space<vmem>>, vector<1x1x32xf32>
      %50 = vector.shape_cast %49 : vector<1x1x32xf32> to vector<1x32xf32>
      %51 = vector.shape_cast %48 : vector<1x32xf32> to vector<1x1x32xf32>
      tpu.vector_store %arg8[%c0_34, %c0_35, %c0_36], %51 {strides = array<i32>} : memref<1x1x32xf32, #tpu.memory_space<vmem>>, vector<1x1x32xf32>,
    } else {
    }
    return
  }
  func.func @transform_0(%arg0: i32, %arg1: i32) -> i32 {
    %c0_i32 = arith.constant 0 : i32
    %c0_i32_0 = arith.constant 0 : i32
    return %c0_i32 : i32
  }
  func.func @transform_1(%arg0: i32, %arg1: i32) -> (i32, i32, i32) {
    %c0_i32 = arith.constant 0 : i32
    %c0_i32_0 = arith.constant 0 : i32
    return %arg0, %arg1, %c0_i32 : i32, i32, i32
  }
  func.func @transform_2(%arg0: i32, %arg1: i32) -> (i32, i32, i32) {
    %c0_i32 = arith.constant 0 : i32
    %c0_i32_0 = arith.constant 0 : i32
    return %arg0, %arg1, %c0_i32 : i32, i32, i32
  }
  func.func @transform_3(%arg0: i32, %arg1: i32) -> (i32, i32) {
    %c0_i32 = arith.constant 0 : i32
    %c0_i32_0 = arith.constant 0 : i32
    %c0_i32_1 = arith.constant 0 : i32
    return %c0_i32, %c0_i32_0 : i32, i32
  }
  func.func @transform_4(%arg0: i32, %arg1: i32) -> (i32, i32) {
    %c0_i32 = arith.constant 0 : i32
    %c0_i32_0 = arith.constant 0 : i32
    %c0_i32_1 = arith.constant 0 : i32
    return %c0_i32, %c0_i32_0 : i32, i32
  }
  func.func @transform_5(%arg0: i32, %arg1: i32) -> (i32, i32, i32) {
    %c0_i32 = arith.constant 0 : i32
    %c0_i32_0 = arith.constant 0 : i32
    %c0_i32_1 = arith.constant 0 : i32
    return %arg0, %c0_i32, %c0_i32_0 : i32, i32, i32
  }
  func.func @transform_6(%arg0: i32, %arg1: i32) -> (i32, i32, i32) {
    %c0_i32 = arith.constant 0 : i32
    %c0_i32_0 = arith.constant 0 : i32
    %c0_i32_1 = arith.constant 0 : i32
    return %arg0, %c0_i32, %c0_i32_0 : i32, i32, i32
  }
}

</mosaic_0001>

<llo_original>
// kernel: tpu_custom_call.1
$region0: #{tpu_custom_call.1}
  #allocation0 [shape = 'u32[]', space=smem, size = 0x4, offset = 0x4, fixed_abs, tag = 'smem constant byte address 0x4 - core index']
  #allocation1 [shape = 'u32[72,128]{1,0:T(1,128)}', space=vmem, size = 0x9000, scoped, tag = 'internal scratch']
  #allocation2 [shape = 'f32[32,32]{1,0:T(8,128)}', space=vmem, size = 0x4000, scoped, tag = 'scratch operand']
  #allocation3 [shape = 'f32[1,32]{1,0:T(1,128)}', space=vmem, size = 0x200, scoped, tag = 'scratch operand']
  #allocation4 [shape = 'f32[1]{0:T(128)S(6)}', space=smem, size = 0x200, scoped, tag = 'scoped memory for tpu_custom_call.1']
  %s0 = inlined_call_operand.<no memory space> [shape: f32[1], index: 0, kind: input, shape index: {}]
  %s1 = inlined_call_operand.hbm [shape: f32[2,8,32], index: 1, kind: input, shape index: {}]
  %s2 = inlined_call_operand.hbm [shape: f32[2,8,32], index: 2, kind: input, shape index: {}]
  %s3 = inlined_call_operand.hbm [shape: bf16[32,64], index: 3, kind: input, shape index: {}]
  %s4 = inlined_call_operand.hbm [shape: f32[32,32], index: 4, kind: input, shape index: {}]
  %s5 = inlined_call_operand.hbm [shape: bf16[2,32,32], index: 5, kind: output, shape index: {0}]
  %s6 = inlined_call_operand.hbm [shape: f32[2,1,32], index: 6, kind: output, shape index: {1}]
  %7 = xla_tuple %s5, %s6
  %s8 = sld [smem:[#allocation0]]
  $region85: #{tpu_custom_call.1} parent=0
    _
  %s10 = ssub.s32 1, %s8
  %s11 = scalar_select 0, %s10, %s8
  %12 = sst [smem:[#allocation4]] %s0
  $region1: #{tpu_custom_call.1} parent=0
    #allocation5 [shape = 'u8[8192]{0}', space=vmem, size = 0x2000, scoped, tag = 'input window, operand 1']
    #allocation6 [shape = 's32[2]{0}', space=sflag, size = 0x8, scoped, tag = 'scoped memory for tpu_custom_call.1']
    #allocation7 [shape = 's32[2]{0}', space=sflag, size = 0x8, scoped, tag = 'scoped memory for tpu_custom_call.1']
    #allocation8 [shape = 'u8[8192]{0}', space=vmem, size = 0x2000, scoped, tag = 'input window, operand 2']
    #allocation9 [shape = 's32[2]{0}', space=sflag, size = 0x8, scoped, tag = 'scoped memory for tpu_custom_call.1']
    #allocation10 [shape = 'u8[8192]{0}', space=vmem, size = 0x2000, scoped, tag = 'input window, operand 3, single buffered']
    #allocation11 [shape = 'u8[16384]{0}', space=vmem, size = 0x4000, scoped, tag = 'input window, operand 4, single buffered']
    #allocation12 [shape = 's32[1]{0}', space=sflag, size = 0x4, scoped, tag = 'scoped memory for tpu_custom_call.1']
    #allocation13 [shape = 'u8[16384]{0}', space=vmem, size = 0x4000, scoped, tag = 'output window, operand 0']
    #allocation14 [shape = 'u8[1024]{0}', space=vmem, size = 0x400, scoped, tag = 'output window, operand 1']
    #allocation15 [shape = 's32[2]{0}', space=sflag, size = 0x8, scoped, tag = 'scoped memory for tpu_custom_call.1']
    %13 = vsyncpa [#allocation6], 0
    %s14 = scalar_lea.sflag [#allocation6], 1
    %15 = vsyncpa %s14, 0
    %16 = vsyncpa [#allocation9], 0
    %s17 = scalar_lea.sflag [#allocation9], 1
    %18 = vsyncpa %s17, 0
    %19 = vsyncpa [#allocation12], 0
    %20 = vsyncpa [#allocation7], 0
    %s21 = scalar_lea.sflag [#allocation7], 1
    %22 = vsyncpa %s21, 0
    %23 = vsyncpa [#allocation15], 0
    %s24 = scalar_lea.sflag [#allocation15], 1
    %25 = vsyncpa %s24, 0
    loop: start=0, step=1, limit=4
    $region2: #{tpu_custom_call.1} parent=1 // loop_pre_header
      _
    $region3: #{tpu_custom_call.1} parent=1 // loop_header
      %s27 = sphi 0, %s31
      %p28 = scmp.ge.s32.totalorder %s27, 4
      %s34 = sphi 0, %s46
      %s35 = sphi 0, %s42
      %s36 = sphi 0, %s34
      %s37 = sphi 0, %s35
      %s38 = sphi 0, %s36
      %s39 = sphi 0, %s37
      %s47 = sphi 0, %s47
      %s49 = sphi 0, %s47
      %s50 = sphi 0, %s49
      %s64 = sphi 0, %s50
      %s72 = sphi 0, %s74
      %s75 = sphi 0, %s72
      %s76 = sphi 0, %s75
      %s92 = sphi 0, %s76
      %s100 = sphi 0, %s102
      %s103 = sphi 0, %s100
      %s104 = sphi 0, %s103
      %s120 = sphi 0, %s104
      %s124 = sphi 0, %s124
      %s126 = sphi 0, %s124
      %s127 = sphi 0, %s126
      %s141 = sphi 0, %s127
      %s145 = sphi 0, %s145
      %s147 = sphi 0, %s145
      %s148 = sphi 0, %s147
      %s162 = sphi 0, %s148
      %s168 = sphi 0, %s170
      %s171 = sphi 0, %s168
      %s172 = sphi 0, %s171
      %s188 = sphi 0, %s172
      %s194 = sphi 0, %s196
      %s197 = sphi 0, %s194
      %s198 = sphi 0, %s197
      %s214 = sphi 0, %s198
    $region4: #{tpu_custom_call.1} parent=1 // loop_header_branch
      %30 = sbr.rel (%p28) target = $region8
    $region5: #{tpu_custom_call.1} parent=1 // loop_body
      %s32 = ssub.s32 %s27, 1
      %s33 = ssub.s32 %s27, 2
      %s40 = sadd.s32 1, %s35
      %p41 = scmp.ge.s32.totalorder %s40, 1
      %s42 = scalar_select %p41, 0, %s40
      %s43 = sadd.s32 1, %s34
      %s44 = scalar_select %p41, %s43, %s34
      %p45 = scmp.ge.s32.totalorder %s44, 2
      %s46 = scalar_select %p45, 0, %s44
      %s48 = sadd.s32 %s47, 1
      %p51 = scmp.eq.s32.totalorder %s27, 1
      %p52 = scmp.ne.s32.totalorder %s47, %s49
      %p53 = scmp.eq.s32.totalorder %s27, 0
      %p54 = por %p52, %p53
      %p55 = scmp.ne.s32.totalorder %s47, %s49
      %p56 = scmp.eq.s32.totalorder %s32, 1
      %p57 = por %p55, %p56
      %p58 = scmp.ne.s32.totalorder %s49, %s50
      %p59 = scmp.eq.s32.totalorder %s32, 0
      %p60 = por %p58, %p59
      %p61 = scmp.ne.s32.totalorder %s49, %s50
      %p62 = scmp.eq.s32.totalorder %s33, 1
      %p63 = por %p61, %p62
      %p65 = scmp.ne.s32.totalorder %s50, %s64
      %p66 = scmp.eq.s32.totalorder %s33, 0
      %p67 = por %p65, %p66
      %s68 = ssub.s32 %s34, %s46
      %s69 = ssub.s32 %s35, %s42
      %s70 = sor.u32 %s68, %s69
      %p71 = scmp.eq.s32.totalorder %s70, 0
      %s73 = sadd.s32 %s72, 1
      %s74 = scalar_select %p71, %s72, %s73
      %p77 = pneg %p71
      %p78 = scmp.eq.s32.totalorder %s27, 1
      %p79 = por %p77, %p78
      %p80 = scmp.ne.s32.totalorder %s72, %s75
      %p81 = scmp.eq.s32.totalorder %s27, 0
      %p82 = por %p80, %p81
      %p83 = scmp.ne.s32.totalorder %s72, %s75
      %p84 = scmp.eq.s32.totalorder %s32, 1
      %p85 = por %p83, %p84
      %p86 = scmp.ne.s32.totalorder %s75, %s76
      %p87 = scmp.eq.s32.totalorder %s32, 0
      %p88 = por %p86, %p87
      %p89 = scmp.ne.s32.totalorder %s75, %s76
      %p90 = scmp.eq.s32.totalorder %s33, 1
      %p91 = por %p89, %p90
      %p93 = scmp.ne.s32.totalorder %s76, %s92
      %p94 = scmp.eq.s32.totalorder %s33, 0
      %p95 = por %p93, %p94
      %s96 = ssub.s32 %s34, %s46
      %s97 = ssub.s32 %s35, %s42
      %s98 = sor.u32 %s96, %s97
      %p99 = scmp.eq.s32.totalorder %s98, 0
      %s101 = sadd.s32 %s100, 1
      %s102 = scalar_select %p99, %s100, %s101
      %p105 = pneg %p99
      %p106 = scmp.eq.s32.totalorder %s27, 1
      %p107 = por %p105, %p106
      %p108 = scmp.ne.s32.totalorder %s100, %s103
      %p109 = scmp.eq.s32.totalorder %s27, 0
      %p110 = por %p108, %p109
      %p111 = scmp.ne.s32.totalorder %s100, %s103
      %p112 = scmp.eq.s32.totalorder %s32, 1
      %p113 = por %p111, %p112
      %p114 = scmp.ne.s32.totalorder %s103, %s104
      %p115 = scmp.eq.s32.totalorder %s32, 0
      %p116 = por %p114, %p115
      %p117 = scmp.ne.s32.totalorder %s103, %s104
      %p118 = scmp.eq.s32.totalorder %s33, 1
      %p119 = por %p117, %p118
      %p121 = scmp.ne.s32.totalorder %s104, %s120
      %p122 = scmp.eq.s32.totalorder %s33, 0
      %p123 = por %p121, %p122
      %s125 = sadd.s32 %s124, 1
      %p128 = scmp.eq.s32.totalorder %s27, 1
      %p129 = scmp.ne.s32.totalorder %s124, %s126
      %p130 = scmp.eq.s32.totalorder %s27, 0
      %p131 = por %p129, %p130
      %p132 = scmp.ne.s32.totalorder %s124, %s126
      %p133 = scmp.eq.s32.totalorder %s32, 1
      %p134 = por %p132, %p133
      %p135 = scmp.ne.s32.totalorder %s126, %s127
      %p136 = scmp.eq.s32.totalorder %s32, 0
      %p137 = por %p135, %p136
      %p138 = scmp.ne.s32.totalorder %s126, %s127
      %p139 = scmp.eq.s32.totalorder %s33, 1
      %p140 = por %p138, %p139
      %p142 = scmp.ne.s32.totalorder %s127, %s141
      %p143 = scmp.eq.s32.totalorder %s33, 0
      %p144 = por %p142, %p143
      %s146 = sadd.s32 %s145, 1
      %p149 = scmp.eq.s32.totalorder %s27, 1
      %p150 = scmp.ne.s32.totalorder %s145, %s147
      %p151 = scmp.eq.s32.totalorder %s27, 0
      %p152 = por %p150, %p151
      %p153 = scmp.ne.s32.totalorder %s145, %s147
      %p154 = scmp.eq.s32.totalorder %s32, 1
      %p155 = por %p153, %p154
      %p156 = scmp.ne.s32.totalorder %s147, %s148
      %p157 = scmp.eq.s32.totalorder %s32, 0
      %p158 = por %p156, %p157
      %p159 = scmp.ne.s32.totalorder %s147, %s148
      %p160 = scmp.eq.s32.totalorder %s33, 1
      %p161 = por %p159, %p160
      %p163 = scmp.ne.s32.totalorder %s148, %s162
      %p164 = scmp.eq.s32.totalorder %s33, 0
      %p165 = por %p163, %p164
      %s166 = ssub.s32 %s34, %s46
      %p167 = scmp.eq.s32.totalorder %s166, 0
      %s169 = sadd.s32 %s168, 1
      %s170 = scalar_select %p167, %s168, %s169
      %p173 = pneg %p167
      %p174 = scmp.eq.s32.totalorder %s27, 1
      %p175 = por %p173, %p174
      %p176 = scmp.ne.s32.totalorder %s168, %s171
      %p177 = scmp.eq.s32.totalorder %s27, 0
      %p178 = por %p176, %p177
      %p179 = scmp.ne.s32.totalorder %s168, %s171
      %p180 = scmp.eq.s32.totalorder %s32, 1
      %p181 = por %p179, %p180
      %p182 = scmp.ne.s32.totalorder %s171, %s172
      %p183 = scmp.eq.s32.totalorder %s32, 0
      %p184 = por %p182, %p183
      %p185 = scmp.ne.s32.totalorder %s171, %s172
      %p186 = scmp.eq.s32.totalorder %s33, 1
      %p187 = por %p185, %p186
      %p189 = scmp.ne.s32.totalorder %s172, %s188
      %p190 = scmp.eq.s32.totalorder %s33, 0
      %p191 = por %p189, %p190
      %s192 = ssub.s32 %s34, %s46
      %p193 = scmp.eq.s32.totalorder %s192, 0
      %s195 = sadd.s32 %s194, 1
      %s196 = scalar_select %p193, %s194, %s195
      %p199 = pneg %p193
      %p200 = scmp.eq.s32.totalorder %s27, 1
      %p201 = por %p199, %p200
      %p202 = scmp.ne.s32.totalorder %s194, %s197
      %p203 = scmp.eq.s32.totalorder %s27, 0
      %p204 = por %p202, %p203
      %p205 = scmp.ne.s32.totalorder %s194, %s197
      %p206 = scmp.eq.s32.totalorder %s32, 1
      %p207 = por %p205, %p206
      %p208 = scmp.ne.s32.totalorder %s197, %s198
      %p209 = scmp.eq.s32.totalorder %s32, 0
      %p210 = por %p208, %p209
      %p211 = scmp.ne.s32.totalorder %s197, %s198
      %p212 = scmp.eq.s32.totalorder %s33, 1
      %p213 = por %p211, %p212
      %p215 = scmp.ne.s32.totalorder %s198, %s214
      %p216 = scmp.eq.s32.totalorder %s33, 0
      %p217 = por %p215, %p216
      %p218 = scmp.le.s32.totalorder 1, %s27
      %p219 = scmp.lt.s32.totalorder %s27, 3
      %p220 = pnand %p218, %p219
      %p221 = pneg %p220
      // Predicated region
      $region9: #{tpu_custom_call.1} parent=5 // pred_check
        _
      $region10: #{tpu_custom_call.1} parent=5 // pred_check_branch
        %223 = sbr.rel (%p220) target = $region12
      $region11: #{tpu_custom_call.1} parent=5 // pred_region
        %s224 = ssub.s32 %s27, 1
        // Predicated region
        $region13: #{tpu_custom_call.1} parent=11 // pred_check
          %p225 = pneg %p60
        $region14: #{tpu_custom_call.1} parent=11 // pred_check_branch
          %227 = sbr.rel (%p225) target = $region16
        $region15: #{tpu_custom_call.1} parent=11 // pred_region
          _
        $region16: #{tpu_custom_call.1} parent=11 // pred_fallthru
          _
        // Predicated region
        $region17: #{tpu_custom_call.1} parent=11 // pred_check
          %p228 = pneg %p137
        $region18: #{tpu_custom_call.1} parent=11 // pred_check_branch
          %230 = sbr.rel (%p228) target = $region20
        $region19: #{tpu_custom_call.1} parent=11 // pred_region
          %232 = vsyncadd [#allocation9], 0
          %s233 = sshll.u32 %s3, 4
          %s234 = int_to_ptr.hbm [resolvable:$true] %s233
          %s235 = sshll.u32 [#allocation10], 4
          %s236 = int_to_ptr.vmem [resolvable:$true] %s235
          %241 = dma.hbm_to_vmem [thread:$0]  %s234, 256, %s236, [#allocation9], 64, 64, 4
        $region20: #{tpu_custom_call.1} parent=11 // pred_fallthru
          _
        // Predicated region
        $region21: #{tpu_custom_call.1} parent=11 // pred_check
          %p242 = pneg %p158
        $region22: #{tpu_custom_call.1} parent=11 // pred_check_branch
          %244 = sbr.rel (%p242) target = $region24
        $region23: #{tpu_custom_call.1} parent=11 // pred_region
          %246 = vsyncadd [#allocation12], 0
          %s247 = sshll.u32 %s4, 4
          %s248 = int_to_ptr.hbm [resolvable:$true] %s247
          %s249 = sshll.u32 [#allocation11], 4
          %s250 = int_to_ptr.vmem [resolvable:$true] %s249
          %255 = dma.hbm_to_vmem [thread:$0]  %s248, 512, %s250, [#allocation12], 128, 128, 8
        $region24: #{tpu_custom_call.1} parent=11 // pred_fallthru
          _
      $region12: #{tpu_custom_call.1} parent=5 // pred_fallthru
        _
      %p256 = scmp.lt.s32.totalorder %s27, 2
      // Predicated region
      $region25: #{tpu_custom_call.1} parent=5 // pred_check
        %p257 = pneg %p256
      $region26: #{tpu_custom_call.1} parent=5 // pred_check_branch
        %259 = sbr.rel (%p257) target = $region28
      $region27: #{tpu_custom_call.1} parent=5 // pred_region
        // Predicated region
        $region29: #{tpu_custom_call.1} parent=27 // pred_check
          %p260 = pneg %p82
        $region30: #{tpu_custom_call.1} parent=27 // pred_check_branch
          %262 = sbr.rel (%p260) target = $region32
        $region31: #{tpu_custom_call.1} parent=27 // pred_region
          %s263 = sand.u32 %s72, 1
          %s264 = scalar_lea.sflag [#allocation6], %s263
          %s265 = sand.u32 %s72, 1
          %s266 = smul.addr %s265, 8
          %s267 = scalar_lea.vmem [#allocation5], %s266
          %269 = vsyncadd %s264, 0
          %s270 = sadd.s32 %s35, %s34
          %s271 = smul.addr %s270, 8
          %s272 = scalar_lea.hbm %s1, %s271
          %s274 = sshll.u32 %s272, 4
          %s275 = int_to_ptr.hbm [resolvable:$true] %s274
          %s276 = sshll.u32 %s267, 4
          %s277 = int_to_ptr.vmem [resolvable:$true] %s276
          %279 = dma.hbm_to_vmem [thread:$0]  %s275, 128, %s277, %s264
        $region32: #{tpu_custom_call.1} parent=27 // pred_fallthru
          _
        // Predicated region
        $region33: #{tpu_custom_call.1} parent=27 // pred_check
          %p280 = pneg %p110
        $region34: #{tpu_custom_call.1} parent=27 // pred_check_branch
          %282 = sbr.rel (%p280) target = $region36
        $region35: #{tpu_custom_call.1} parent=27 // pred_region
          %s283 = sand.u32 %s27, 1
          %s284 = scalar_lea.sflag [#allocation9], %s283
          %s285 = sand.u32 %s100, 1
          %s286 = smul.addr %s285, 8
          %s287 = scalar_lea.vmem [#allocation8], %s286
          %289 = vsyncadd %s284, 0
          %s290 = sadd.s32 %s35, %s34
          %s291 = smul.addr %s290, 8
          %s292 = scalar_lea.hbm %s2, %s291
          %s294 = sshll.u32 %s292, 4
          %s295 = int_to_ptr.hbm [resolvable:$true] %s294
          %s296 = sshll.u32 %s287, 4
          %s297 = int_to_ptr.vmem [resolvable:$true] %s296
          %299 = dma.hbm_to_vmem [thread:$0]  %s295, 128, %s297, %s284
        $region36: #{tpu_custom_call.1} parent=27 // pred_fallthru
          _
      $region28: #{tpu_custom_call.1} parent=5 // pred_fallthru
        _
      %p300 = scmp.le.s32.totalorder 1, %s27
      %p301 = scmp.lt.s32.totalorder %s27, 3
      %p302 = pnand %p300, %p301
      %p303 = pneg %p302
      // Predicated region
      $region37: #{tpu_custom_call.1} parent=5 // pred_check
        _
      $region38: #{tpu_custom_call.1} parent=5 // pred_check_branch
        %305 = sbr.rel (%p302) target = $region40
      $region39: #{tpu_custom_call.1} parent=5 // pred_region
        %s306 = ssub.s32 %s27, 1
        %s307 = sand.u32 %s75, 1
        %s308 = scalar_lea.sflag [#allocation6], %s307
        %s309 = sand.u32 %s75, 1
        %s310 = smul.addr %s309, 8
        %s311 = scalar_lea.vmem [#allocation5], %s310
        // Predicated region
        $region41: #{tpu_custom_call.1} parent=39 // pred_check
          %p312 = pneg %p88
        $region42: #{tpu_custom_call.1} parent=39 // pred_check_branch
          %314 = sbr.rel (%p312) target = $region44
        $region43: #{tpu_custom_call.1} parent=39 // pred_region
          %316 = dma.done %s308, 128
        $region44: #{tpu_custom_call.1} parent=39 // pred_fallthru
          _
        %s317 = sand.u32 %s32, 1
        %s318 = scalar_lea.sflag [#allocation9], %s317
        %s319 = sand.u32 %s103, 1
        %s320 = smul.addr %s319, 8
        %s321 = scalar_lea.vmem [#allocation8], %s320
        // Predicated region
        $region45: #{tpu_custom_call.1} parent=39 // pred_check
          %p322 = pneg %p116
        $region46: #{tpu_custom_call.1} parent=39 // pred_check_branch
          %324 = sbr.rel (%p322) target = $region48
        $region47: #{tpu_custom_call.1} parent=39 // pred_region
          %326 = dma.done %s318, 128
        $region48: #{tpu_custom_call.1} parent=39 // pred_fallthru
          _
        // Predicated region
        $region49: #{tpu_custom_call.1} parent=39 // pred_check
          %p327 = pneg %p137
        $region50: #{tpu_custom_call.1} parent=39 // pred_check_branch
          %329 = sbr.rel (%p327) target = $region52
        $region51: #{tpu_custom_call.1} parent=39 // pred_region
          %331 = dma.done [#allocation9], 256
        $region52: #{tpu_custom_call.1} parent=39 // pred_fallthru
          _
        // Predicated region
        $region53: #{tpu_custom_call.1} parent=39 // pred_check
          %p332 = pneg %p158
        $region54: #{tpu_custom_call.1} parent=39 // pred_check_branch
          %334 = sbr.rel (%p332) target = $region56
        $region55: #{tpu_custom_call.1} parent=39 // pred_region
          %336 = dma.done [#allocation12], 512
        $region56: #{tpu_custom_call.1} parent=39 // pred_fallthru
          _
        %p337 = pneg %p60
        %p338 = pneg %p57
        %s339 = sand.u32 %s75, 1
        %s340 = scalar_lea.sflag [#allocation6], %s339
        %s341 = sand.u32 %s75, 1
        %s342 = smul.addr %s341, 8
        %s343 = scalar_lea.vmem [#allocation5], %s342
        %p344 = pneg %p88
        %p345 = pneg %p85
        %s346 = sand.u32 %s32, 1
        %s347 = scalar_lea.sflag [#allocation9], %s346
        %s348 = sand.u32 %s103, 1
        %s349 = smul.addr %s348, 8
        %s350 = scalar_lea.vmem [#allocation8], %s349
        %p351 = pneg %p116
        %p352 = pneg %p113
        %p353 = pneg %p137
        %p354 = pneg %p134
        %p355 = pneg %p158
        %p356 = pneg %p155
        %p357 = pneg %p184
        %p358 = pneg %p181
        %s359 = sand.u32 %s171, 1
        %s360 = scalar_lea.sflag [#allocation7], %s359
        %s361 = sand.u32 %s171, 1
        %s362 = smul.addr %s361, 16
        %s363 = scalar_lea.vmem [#allocation13], %s362
        %p364 = pneg %p210
        %p365 = pneg %p207
        %s366 = sand.u32 %s197, 1
        %s367 = scalar_lea.sflag [#allocation15], %s366
        %s368 = sand.u32 %s197, 1
        %s369 = scalar_lea.vmem [#allocation14], %s368
        %p371 = scmp.eq.s32.totalorder %s37, 0
        // Predicated region
        $region57: #{tpu_custom_call.1} parent=39 // pred_check
          %p372 = pneg %p371
        $region58: #{tpu_custom_call.1} parent=39 // pred_check_branch
          %374 = sbr.rel (%p372) target = $region60
        $region59: #{tpu_custom_call.1} parent=39 // pred_region
          %vm375 = vcmask 261120
          %376 = vst.msk [vmem:[#allocation2] sm:$0xff] %vm375, 0.0
          %377 = vst.msk [vmem:[#allocation2 + $0x8] sm:$0xff] %vm375, 0.0
          %378 = vst.msk [vmem:[#allocation2 + $0x10] sm:$0xff] %vm375, 0.0
          %379 = vst.msk [vmem:[#allocation2 + $0x18] sm:$0xff] %vm375, 0.0
          %vm380 = vcmask 253952
          %381 = vst.msk [vmem:[#allocation3] sm:$0x1] %vm380, 0.0
        $region60: #{tpu_custom_call.1} parent=39 // pred_fallthru
          _
        %s382 = sld [smem:[#allocation4]]
        %v383 = vld [vmem:[%s311] sm:$0xff]
        %v384 = vstv %s382
        %v385 = vmul.f32 %v384, %v383
        %s386 = ssub.f32 1.0, %s382
        %v387 = vld [vmem:[%s321] sm:$0xff]
        %v388 = vstv %s386
        %v389 = vmul.f32 %v388, %v387
        %v390 = vadd.f32 %v385, %v389
        %v391 = vpack.c.bf16 %v390, %v390
        %v392 = vld [vmem:[#allocation10] sm:$0xf]
        %v393 = vld [vmem:[#allocation10 + $0x4] sm:$0xf]
        %v394 = vld [vmem:[#allocation10 + $0x8] sm:$0xf]
        %v395 = vld [vmem:[#allocation10 + $0xc] sm:$0xf]
        %v400 = vunpack.c.l.b16 %v392
        %v401 = vunpack.c.l.b16 %v393
        %v402 = vunpack.c.l.b16 %v394
        %v403 = vunpack.c.l.b16 %v395
        %v404 = vpack.c.b16 %v401, %v400
        %v405 = vpack.c.b16 %v403, %v402
        %vm408 = vcmask 261120
        %v410 = vsel %vm408, %v391, 0
        %412 = vmatpush.bf16.msra.mxu0 0
        %413 = vmatpush.bf16.msra.mxu0 0
        %414 = vmatpush.bf16.msra.mxu0 0
        %415 = vmatpush.bf16.msra.mxu0 0
        %416 = vmatpush.bf16.msra.mxu0 0
        %417 = vmatpush.bf16.msra.mxu0 0
        %418 = vmatpush.bf16.msra.mxu0 %v405
        %419 = vmatpush.bf16.msra.mxu0 %v404
        %420 = vmatmul.bf16.gmra.mxu0 %v410
        %v421 = vpop.f32.mrf.mxu0
        %v422 = vadd.f32 0.0, %v421
        %v423 = vpop.f32.mrf.mxu0
        %424 = vdwg.mxu0
        %vm425 = vcmp.gt.f32.partialorder %v422, 0.0
        %v426 = vadd.f32 %v422, 1.0
        %v427 = vmin.f32 %v422, 0.0
        %v428 = vmul.f32 %v427, 1.442695
        %v429 = vpow.pop %v428
        %v430 = vsel %vm425, %v426, %v429
        %v431 = vld [vmem:[#allocation2] sm:$0xff]
        %v432 = vld [vmem:[#allocation2 + $0x8] sm:$0xff]
        %v433 = vld [vmem:[#allocation2 + $0x10] sm:$0xff]
        %v434 = vld [vmem:[#allocation2 + $0x18] sm:$0xff]
        %v435 = vpack.c.bf16 %v430, %v430
        %v436 = vpack.c.bf16 %v422, %v422
        %437 = vxpose.xlu0.c.b16.start [1/8] %v435, 128
        %438 = vxpose.xlu0.c.b16.cont [2/8] 0, 128
        %439 = vxpose.xlu0.c.b16.cont [3/8] 0, 128
        %440 = vxpose.xlu0.c.b16.cont [4/8] 0, 128
        %441 = vxpose.xlu0.c.b16.cont [5/8] 0, 128
        %442 = vxpose.xlu0.c.b16.cont [6/8] 0, 128
        %443 = vxpose.xlu0.c.b16.cont [7/8] 0, 128
        %444 = vxpose.xlu0.c.b16.end [8/8] 0, 128
        %v445 = vpop.trf.xlu0
        %v446 = vpop.trf.xlu0
        %v447 = vpop.trf.xlu0
        %v448 = vpop.trf.xlu0
        %v449 = vpop.trf.xlu0
        %v450 = vpop.trf.xlu0
        %v451 = vpop.trf.xlu0
        %v452 = vpop.trf.xlu0
        %454 = vrot.lane.b32.xlu0 %v436, 96
        %v455 = vpop.permute.xlu0 %454
        %vm456 = vcmask 64512
        %v458 = vsel %vm456, %v445, 0
        %v461 = vsel %vm456, %v446, 0
        %vm463 = vcmask 1043456
        %v465 = vsel %vm463, %v455, 0
        %467 = vmatpush.bf16.msra.mxu0 0
        %468 = vmatpush.bf16.msra.mxu0 0
        %469 = vmatpush.bf16.msra.mxu0 0
        %470 = vmatpush.bf16.msra.mxu0 0
        %471 = vmatpush.bf16.msra.mxu0 0
        %472 = vmatpush.bf16.msra.mxu0 0
        %473 = vmatpush.bf16.msra.mxu0 0
        %474 = vmatpush.bf16.msra.mxu0 %v465
        %475 = vmatmul.bf16.gmra.mxu0 %v458
        %v476 = vpop.f32.mrf.mxu0
        %v477 = vadd.f32 0.0, %v476
        %v478 = vpop.f32.mrf.mxu0
        %v479 = vadd.f32 0.0, %v478
        %480 = vmatmul.bf16.gmra.mxu0 %v461
        %v481 = vpop.f32.mrf.mxu0
        %v482 = vadd.f32 0.0, %v481
        %v483 = vpop.f32.mrf.mxu0
        %v484 = vadd.f32 0.0, %v483
        %485 = vdwg.mxu0
        %v486 = vadd.f32 %v431, %v477
        %v487 = vadd.f32 %v432, %v479
        %v488 = vadd.f32 %v433, %v482
        %v489 = vadd.f32 %v434, %v484
        %490 = vst.msk [vmem:[#allocation2] sm:$0xff] %vm408, %v486
        %491 = vst.msk [vmem:[#allocation2 + $0x8] sm:$0xff] %vm408, %v487
        %492 = vst.msk [vmem:[#allocation2 + $0x10] sm:$0xff] %vm408, %v488
        %493 = vst.msk [vmem:[#allocation2 + $0x18] sm:$0xff] %vm408, %v489
        %v494 = vld [vmem:[#allocation3] sm:$0x1]
        %v495 = vsel %vm408, %v430, 0.0
        %v496 = vrot.slane %v495, 4
        %v497 = vadd.f32 %v495, %v496
        %v498 = vrot.slane %v497, 2
        %v499 = vadd.f32 %v497, %v498
        %v500 = vrot.slane %v499, 1
        %v501 = vadd.f32 %v499, %v500
        %v502 = vadd.f32 %v494, %v501
        %vm503 = vcmask 253952
        %504 = vst.msk [vmem:[#allocation3] sm:$0x1] %vm503, %v502
        // Predicated region
        $region61: #{tpu_custom_call.1} parent=39 // pred_check
          %p505 = pneg %p371
        $region62: #{tpu_custom_call.1} parent=39 // pred_check_branch
          %507 = sbr.rel (%p505) target = $region64
        $region63: #{tpu_custom_call.1} parent=39 // pred_region
          %v508 = vld [vmem:[#allocation2] sm:$0xff]
          %v509 = vld [vmem:[#allocation2 + $0x8] sm:$0xff]
          %v510 = vld [vmem:[#allocation2 + $0x10] sm:$0xff]
          %v511 = vld [vmem:[#allocation2 + $0x18] sm:$0xff]
          %v512 = vld [vmem:[#allocation11] sm:$0xff]
          %v513 = vld [vmem:[#allocation11 + $0x8] sm:$0xff]
          %v514 = vld [vmem:[#allocation11 + $0x10] sm:$0xff]
          %v515 = vld [vmem:[#allocation11 + $0x18] sm:$0xff]
          %v516 = vmul.f32 %v508, %v512
          %v517 = vmul.f32 %v509, %v513
          %v518 = vmul.f32 %v510, %v514
          %v519 = vmul.f32 %v511, %v515
          %v520 = vpack.c.bf16 %v516, %v516
          %v521 = vpack.c.bf16 %v517, %v517
          %v522 = vpack.c.bf16 %v518, %v518
          %v523 = vpack.c.bf16 %v519, %v519
          %vm524 = vcmask 257024
          %525 = vst.msk [vmem:[%s363] sm:$0xf] %vm524, %v520
          %526 = vst.msk [vmem:[%s363 + $0x4] sm:$0xf] %vm524, %v521
          %527 = vst.msk [vmem:[%s363 + $0x8] sm:$0xf] %vm524, %v522
          %528 = vst.msk [vmem:[%s363 + $0xc] sm:$0xf] %vm524, %v523
          %v529 = vld [vmem:[#allocation3] sm:$0x1]
          %530 = vst.msk [vmem:[%s369] sm:$0x1] %vm503, %v529
        $region64: #{tpu_custom_call.1} parent=39 // pred_fallthru
          _
        %s531 = sand.u32 %s171, 1
        %s532 = scalar_lea.sflag [#allocation7], %s531
        %s533 = sand.u32 %s171, 1
        %s534 = smul.addr %s533, 16
        %s535 = scalar_lea.vmem [#allocation13], %s534
        %s536 = sand.u32 %s197, 1
        %s537 = scalar_lea.sflag [#allocation15], %s536
        %s538 = sand.u32 %s197, 1
        %s539 = scalar_lea.vmem [#allocation14], %s538
        // Predicated region
        $region65: #{tpu_custom_call.1} parent=39 // pred_check
          %p540 = pneg %p181
        $region66: #{tpu_custom_call.1} parent=39 // pred_check_branch
          %542 = sbr.rel (%p540) target = $region68
        $region67: #{tpu_custom_call.1} parent=39 // pred_region
          %544 = vsyncadd %s532, 0
          %s545 = smul.addr %s36, 4
          %s546 = smul.addr %s545, 4
          %s547 = scalar_lea.hbm %s5, %s546
          %s548 = sshll.u32 %s535, 4
          %s549 = int_to_ptr.vmem [resolvable:$true] %s548
          %s550 = sshll.u32 %s547, 4
          %s551 = int_to_ptr.hbm [resolvable:$true] %s550
          %556 = dma.vmem_to_hbm [thread:$0]  %s549, 256, %s551, %s532, 64, 64, 4
        $region68: #{tpu_custom_call.1} parent=39 // pred_fallthru
          _
        // Predicated region
        $region69: #{tpu_custom_call.1} parent=39 // pred_check
          %p557 = pneg %p207
        $region70: #{tpu_custom_call.1} parent=39 // pred_check_branch
          %559 = sbr.rel (%p557) target = $region72
        $region71: #{tpu_custom_call.1} parent=39 // pred_region
          %561 = vsyncadd %s537, 0
          %s562 = scalar_lea.hbm %s6, %s36
          %s564 = sshll.u32 %s539, 4
          %s565 = int_to_ptr.vmem [resolvable:$true] %s564
          %s566 = sshll.u32 %s562, 4
          %s567 = int_to_ptr.hbm [resolvable:$true] %s566
          %569 = dma.vmem_to_hbm [thread:$0]  %s565, 16, %s567, %s537
        $region72: #{tpu_custom_call.1} parent=39 // pred_fallthru
          _
      $region40: #{tpu_custom_call.1} parent=5 // pred_fallthru
        _
      %p570 = scmp.le.s32.totalorder 2, %s27
      // Predicated region
      $region73: #{tpu_custom_call.1} parent=5 // pred_check
        %p571 = pneg %p570
      $region74: #{tpu_custom_call.1} parent=5 // pred_check_branch
        %573 = sbr.rel (%p571) target = $region76
      $region75: #{tpu_custom_call.1} parent=5 // pred_region
        %s574 = ssub.s32 %s27, 2
        // Predicated region
        $region77: #{tpu_custom_call.1} parent=75 // pred_check
          %p575 = pneg %p187
        $region78: #{tpu_custom_call.1} parent=75 // pred_check_branch
          %577 = sbr.rel (%p575) target = $region80
        $region79: #{tpu_custom_call.1} parent=75 // pred_region
          %s578 = sand.u32 %s172, 1
          %s579 = scalar_lea.sflag [#allocation7], %s578
          %s580 = sand.u32 %s172, 1
          %s581 = smul.addr %s580, 16
          %s582 = scalar_lea.vmem [#allocation13], %s581
          %584 = dma.done %s579, 256
        $region80: #{tpu_custom_call.1} parent=75 // pred_fallthru
          _
        // Predicated region
        $region81: #{tpu_custom_call.1} parent=75 // pred_check
          %p585 = pneg %p213
        $region82: #{tpu_custom_call.1} parent=75 // pred_check_branch
          %587 = sbr.rel (%p585) target = $region84
        $region83: #{tpu_custom_call.1} parent=75 // pred_region
          %s588 = sand.u32 %s198, 1
          %s589 = scalar_lea.sflag [#allocation15], %s588
          %s590 = sand.u32 %s198, 1
          %s591 = scalar_lea.vmem [#allocation14], %s590
          %593 = dma.done %s589, 16
        $region84: #{tpu_custom_call.1} parent=75 // pred_fallthru
          _
      $region76: #{tpu_custom_call.1} parent=5 // pred_fallthru
        _
    $region6: #{tpu_custom_call.1} parent=1 // loop_footer
      %s31 = sadd.s32 1, %s27
    $region7: #{tpu_custom_call.1} parent=1 // loop_footer_branch
      %26 = sbr.rel target = $region3
    $region8: #{tpu_custom_call.1} parent=1 // loop_exit
      _
    %594 = vsyncpa [#allocation6], 1
    %s595 = scalar_lea.sflag [#allocation6], 1
    %596 = vsyncpa %s595, 1
    %597 = vsyncpa [#allocation9], 1
    %s598 = scalar_lea.sflag [#allocation9], 1
    %599 = vsyncpa %s598, 1
    %600 = vsyncpa [#allocation12], 1
    %601 = vsyncpa [#allocation7], 1
    %s602 = scalar_lea.sflag [#allocation7], 1
    %603 = vsyncpa %s602, 1
    %604 = vsyncpa [#allocation15], 1
    %s605 = scalar_lea.sflag [#allocation15], 1
    %606 = vsyncpa %s605, 1

</llo_original>
